<compile_context>
chip_gen: v7x
topology: tpu7x:2x2x1
jax: 0.10.0
libtpu: 0.0.40
codegen_flags: <defaults>
</compile_context>

<pallas_src>
import functools

import jax
import jax.numpy as jnp
from jax import lax
from jax.experimental import pallas as pl
from jax.experimental.pallas import tpu as pltpu


_TARGET_BLOCK_BYTES = 8 * 1024 * 1024  # ~8 MiB per input block (x2 double-buffered)
_VMEM_LIMIT_BYTES = 32 * 1024 * 1024


def _round_up(a, b):
    return ((a + b - 1) // b) * b


def _gap_single_kernel(inv_hw, x_ref, o_ref):
    """H*W fits in one block: reduce and store directly (no accumulator)."""
    x = x_ref[...].astype(jnp.float32)
    o_ref[...] = (jnp.sum(x, axis=-1, keepdims=True) * inv_hw).astype(o_ref.dtype)


def _gap_reduce_kernel(inv_hw, num_hw_tiles, tile_hw, hw_rem, x_ref, o_ref, acc_ref):
    """H*W tiled across the innermost grid axis with an f32 accumulator."""
    k = pl.program_id(1)  # reduction step over the H*W axis (innermost)

    @pl.when(k == 0)
    def _init():
        acc_ref[...] = jnp.zeros_like(acc_ref)

    x = x_ref[...].astype(jnp.float32)
    if hw_rem:
        # Last spatial tile is partial: zero the out-of-range columns so they
        # do not pollute the sum.  (Static branch; compiled away entirely when
        # H*W divides the spatial tile.  VALU work is free filler here since
        # the kernel is HBM-bound.)
        col = lax.broadcasted_iota(jnp.int32, x.shape, 1)
        valid = jnp.where(k == num_hw_tiles - 1, hw_rem, tile_hw)
        x = jnp.where(col < valid, x, 0.0)

    acc_ref[...] += jnp.sum(x, axis=-1, keepdims=True)

    @pl.when(k == num_hw_tiles - 1)
    def _finalize():
        o_ref[...] = (acc_ref[...] * inv_hw).astype(o_ref.dtype)


def global_average_pooling2d(x, *, target_block_bytes=_TARGET_BLOCK_BYTES):
    """Equivalent of nn.AdaptiveAvgPool2d(1) applied to NCHW input."""
    n, c, h, w = x.shape
    rows = n * c
    hw = h * w
    x2d = x.reshape(rows, hw)

    dtype_bytes = jnp.dtype(x.dtype).itemsize
    block_elems = max(8 * 128, target_block_bytes // dtype_bytes)
    rows8 = _round_up(rows, 8)
    inv_hw = 1.0 / float(hw)

    if hw * 8 <= block_elems:
        # Whole spatial extent fits comfortably in one block: 1-D row grid.
        tile_hw = hw
        tile_rows = min(max(8, ((block_elems // hw) // 8) * 8), rows8)
        if tile_rows >= rows8 and rows8 >= 16:
            # Prefer >=2 row-grid steps so v7x can shard across its 2 TCs.
            tile_rows = _round_up(pl.cdiv(rows8, 2), 8)
        num_row_tiles = pl.cdiv(rows, tile_rows)

        grid_spec = pltpu.PrefetchScalarGridSpec(
            num_scalar_prefetch=0,
            grid=(num_row_tiles,),
            in_specs=[pl.BlockSpec((tile_rows, tile_hw), lambda i: (i, 0))],
            out_specs=pl.BlockSpec((tile_rows, 1), lambda i: (i, 0)),
        )
        kernel = functools.partial(_gap_single_kernel, inv_hw)
        dim_sem = ("parallel",)
    else:
        # Huge H*W: tile the spatial axis (multiple of 128 lanes) and reduce
        # across a second (innermost) grid dimension into a VMEM accumulator.
        tile_rows = 8
        tile_hw = max(128, ((block_elems // tile_rows) // 128) * 128)
        num_row_tiles = pl.cdiv(rows, tile_rows)
        num_hw_tiles = pl.cdiv(hw, tile_hw)
        hw_rem = hw % tile_hw

        grid_spec = pltpu.PrefetchScalarGridSpec(
            num_scalar_prefetch=0,
            grid=(num_row_tiles, num_hw_tiles),  # reduction axis last
            in_specs=[pl.BlockSpec((tile_rows, tile_hw), lambda i, k: (i, k))],
            out_specs=pl.BlockSpec((tile_rows, 1), lambda i, k: (i, 0)),
            scratch_shapes=[pltpu.VMEM((tile_rows, 1), jnp.float32)],
        )
        kernel = functools.partial(
            _gap_reduce_kernel, inv_hw, num_hw_tiles, tile_hw, hw_rem
        )
        dim_sem = ("parallel", "arbitrary")

    out2d = pl.pallas_call(
        kernel,
        out_shape=jax.ShapeDtypeStruct((rows, 1), x.dtype),
        grid_spec=grid_spec,
        compiler_params=pltpu.CompilerParams(
            dimension_semantics=dim_sem,
            vmem_limit_bytes=_VMEM_LIMIT_BYTES,
        ),
    )(x2d)

    return out2d.reshape(n, c, 1, 1)


if __name__ == "__main__":
    key = jax.random.PRNGKey(0)
    k1, k2, k3 = jax.random.split(key, 3)

    # Main small test shape (matches the module's intended NCHW usage).
    x = jax.random.normal(k1, (2, 4, 16, 16), dtype=jnp.float32)
    out = jax.block_until_ready(global_average_pooling2d(x))
    ref = jnp.mean(x, axis=(2, 3), keepdims=True)
    assert out.shape == (2, 4, 1, 1), out.shape
    assert jnp.allclose(out, ref, atol=1e-5, rtol=1e-5), "mismatch vs reference"

    # Partial-row-tile path (N*C not a multiple of 8 / the row tile).
    x2 = jax.random.normal(k2, (1, 20, 16, 16), dtype=jnp.float32)
    out2 = jax.block_until_ready(global_average_pooling2d(x2))
    ref2 = jnp.mean(x2, axis=(2, 3), keepdims=True)
    assert out2.shape == (1, 20, 1, 1), out2.shape
    assert jnp.allclose(out2, ref2, atol=1e-5, rtol=1e-5), "mismatch (partial rows)"

    # Spatial-reduction path with a partial last spatial tile (force tiny
    # blocks so the multi-tile reduce kernel is exercised at small shapes).
    x3 = jax.random.normal(k3, (1, 8, 33, 40), dtype=jnp.bfloat16)
    out3 = jax.block_until_ready(
        global_average_pooling2d(x3, target_block_bytes=8 * 1024)
    )
    ref3 = jnp.mean(x3.astype(jnp.float32), axis=(2, 3), keepdims=True).astype(
        jnp.bfloat16
    )
    assert out3.shape == (1, 8, 1, 1), out3.shape
    assert jnp.allclose(
        out3.astype(jnp.float32), ref3.astype(jnp.float32), atol=2e-2, rtol=2e-2
    ), "mismatch (spatial tiling)"

    print("KERNEL_OK")
</pallas_src>

<mosaic_0001>
module attributes {stable_mosaic.version = 11 : i64} {
  func.func @_gap_single_kernel(%arg0: i32, %arg1: memref<8x256xf32, #tpu.memory_space<vmem>>, %arg2: memref<8x1xf32, #tpu.memory_space<vmem>>) attributes {dimension_semantics = [#tpu.dimension_semantics<parallel>], iteration_bounds = array<i64: 1>, scalar_prefetch = 0 : i64, scratch_operands = 0 : i64, tpu.core_type = #tpu.core_type<tc>, window_params = [{transform_indices = @transform_0, window_bounds = array<i64: 8, 256>}, {transform_indices = @transform_1, window_bounds = array<i64: 8, 1>}]} {
    %c0 = arith.constant 0 : index
    %c0_0 = arith.constant 0 : index
    %0 = vector.load %arg1[%c0, %c0_0] : memref<8x256xf32, #tpu.memory_space<vmem>>, vector<8x256xf32>
    %cst = arith.constant dense<0.000000e+00> : vector<8xf32>
    %1 = vector.multi_reduction <add>, %0, %cst [1] : vector<8x256xf32> to vector<8xf32>
    %2 = vector.shape_cast %1 : vector<8xf32> to vector<8x1xf32>
    %cst_1 = arith.constant 3.906250e-03 : f32
    %3 = vector.broadcast %cst_1 : f32 to vector<8x1xf32>
    %4 = arith.mulf %2, %3 : vector<8x1xf32>
    %c0_2 = arith.constant 0 : index
    %c0_3 = arith.constant 0 : index
    %5 = vector.load %arg2[%c0_2, %c0_3] : memref<8x1xf32, #tpu.memory_space<vmem>>, vector<8x1xf32>
    tpu.vector_store %arg2[%c0_2, %c0_3], %4 {strides = array<i32>} : memref<8x1xf32, #tpu.memory_space<vmem>>, vector<8x1xf32>,
    return
  }
  func.func @transform_0(%arg0: i32) -> (i32, i32) {
    %c0_i32 = arith.constant 0 : i32
    %c0_i32_0 = arith.constant 0 : i32
    return %arg0, %c0_i32 : i32, i32
  }
  func.func @transform_1(%arg0: i32) -> (i32, i32) {
    %c0_i32 = arith.constant 0 : i32
    %c0_i32_0 = arith.constant 0 : i32
    return %arg0, %c0_i32 : i32, i32
  }
}

</mosaic_0001>

<llo_original>
// kernel: tpu_custom_call.1
$region0: #{tpu_custom_call.1}
  #allocation0 [shape = 'u32[]', space=smem, size = 0x4, offset = 0x4, fixed_abs, tag = 'smem constant byte address 0x4 - core index']
  #allocation1 [shape = 'u32[144,128]{1,0:T(1,128)}', space=vmem, size = 0x12000, scoped, tag = 'internal scratch']
  %s0 = inlined_call_operand.hbm [shape: f32[8,256], index: 0, kind: input, shape index: {}]
  %s1 = inlined_call_operand.vmem [shape: f32[8,1], index: 1, kind: output, shape index: {}]
  %s2 = sld [smem:[#allocation0]]
  $region18: #{tpu_custom_call.1} parent=0
    _
  %s4 = ssub.s32 1, %s2
  %s5 = scalar_select 0, %s4, %s2
  $region1: #{tpu_custom_call.1} parent=0
    #allocation2 [shape = 'u8[8192]{0}', space=vmem, size = 0x2000, scoped, tag = 'input window, operand 0, single buffered']
    #allocation3 [shape = 's32[1]{0}', space=sflag, size = 0x4, scoped, tag = 'scoped memory for tpu_custom_call.1']
    %6 = vsyncpa [#allocation3], 0
    // Predicated region
    $region2: #{tpu_custom_call.1} parent=1 // pred_check
      _
    $region3: #{tpu_custom_call.1} parent=1 // pred_check_branch
      %8 = sbr.rel (0) target = $region5
    $region4: #{tpu_custom_call.1} parent=1 // pred_region
      %s10 = ssub.s32 256, 256
      %11 = vsyncadd [#allocation3], %s10
      %s13 = sshll.u32 [#allocation2], 4
      %s14 = int_to_ptr.vmem [resolvable:$true] %s13
      %16 = dma.hbm_to_vmem [thread:$0]  %s0, 256, %s14, [#allocation3]
    $region5: #{tpu_custom_call.1} parent=1 // pred_fallthru
      _
    // Predicated region
    $region6: #{tpu_custom_call.1} parent=1 // pred_check
      _
    $region7: #{tpu_custom_call.1} parent=1 // pred_check_branch
      %18 = sbr.rel (0) target = $region9
    $region8: #{tpu_custom_call.1} parent=1 // pred_region
      %19 = dma.done [#allocation3], 256
    $region9: #{tpu_custom_call.1} parent=1 // pred_fallthru
      _
    %v20 = vld [vmem:[#allocation2] sm:$0xff]
    %v21 = vld [vmem:[#allocation2 + $0x8] sm:$0xff]
    %v22 = vadd.f32 %v20, %v21
    %23 = vadd.xlane.f32.xlu0 %v22
    %v24 = vpop.xlane.xlu0 %23
    %v25 = vmul.f32 %v24, 0.00390625
    %vm26 = vcmask 7168
    %27 = vst.msk [vmem:[%s1] sm:$0xff] %vm26, %v25
    // Predicated region
    $region10: #{tpu_custom_call.1} parent=1 // pred_check
      _
    $region11: #{tpu_custom_call.1} parent=1 // pred_check_branch
      %29 = sbr.rel (0) target = $region13
    $region12: #{tpu_custom_call.1} parent=1 // pred_region
      _
    $region13: #{tpu_custom_call.1} parent=1 // pred_fallthru
      _
    // Predicated region
    $region14: #{tpu_custom_call.1} parent=1 // pred_check
      _
    $region15: #{tpu_custom_call.1} parent=1 // pred_check_branch
      %31 = sbr.rel (0) target = $region17
    $region16: #{tpu_custom_call.1} parent=1 // pred_region
      _
    $region17: #{tpu_custom_call.1} parent=1 // pred_fallthru
      _
    %32 = vsyncpa [#allocation3], 1

</llo_original>
